<compile_context>
chip_gen: v7x
topology: tpu7x:2x2x1
jax: 0.10.0
libtpu: 0.0.40
codegen_flags: <defaults>
</compile_context>

<pallas_src>
import functools

import jax
import jax.numpy as jnp
from jax.experimental import pallas as pl
from jax.experimental.pallas import tpu as pltpu


def _affine_kernel(x_ref, cond_ref, o_ref, *, c_h, eps, inv_t):
    """Instance-norm + modulation for one (NB, c_h, T) block.

    x_ref    : (NB, c_h, T)     content features
    cond_ref : (NB, 2*c_h, 1)   precomputed Linear(x_cond): [mean; std] columns
    o_ref    : (NB, c_h, T)     modulated output
    """
    cond = cond_ref[...].astype(jnp.float32)              # (NB, 2*c_h, 1)
    mean_c = cond[:, :c_h, :]                              # (NB, c_h, 1) shift
    std_c = cond[:, c_h:, :]                               # (NB, c_h, 1) scale

    # InstanceNorm1d (affine=False): biased variance over T, eps inside rsqrt.
    # Two-pass centered stats in f32 (no E[x^2]-E[x]^2 cancellation).
    mu = jnp.sum(x_ref[...].astype(jnp.float32), axis=-1, keepdims=True) * inv_t
    xm = x_ref[...].astype(jnp.float32) - mu
    var = jnp.sum(xm * xm, axis=-1, keepdims=True) * inv_t
    scale = jax.lax.rsqrt(var + eps) * std_c               # EUP rsqrt, per-channel col

    # Apply re-indexes x_ref so no slab-sized value must stay live across
    # phases; hot path is one sub, one mul, one add per element.
    o_ref[...] = ((x_ref[...].astype(jnp.float32) - mu) * scale
                  + mean_c).astype(o_ref.dtype)


def _pick_batch_block(n, per_batch_bytes, target_bytes=2 << 20):
    """Largest divisor of n with block <= target; keep >=2 grid steps if possible."""
    nb = 1
    for d in range(1, n + 1):
        if n % d == 0 and d * per_batch_bytes <= target_bytes:
            nb = d
    if n >= 2 and nb == n:   # leave >= 2 grid steps so both v7x TCs get work
        for d in range(n // 2, 0, -1):
            if n % d == 0:
                nb = d
                break
    return nb


def affine_layer_forward(x, x_cond, w, b, eps=1e-5):
    """x: (N, c_h, T), x_cond: (N, c_cond), w: (2*c_h, c_cond), b: (2*c_h,)."""
    N, c_h, T = x.shape
    c_cond = x_cond.shape[1]
    assert w.shape == (2 * c_h, c_cond)
    assert b.shape == (2 * c_h,)

    # Conditioning linear hoisted to a single MXU matmul for the whole batch;
    # kernel then only streams x once in and the result once out.
    cond = (x_cond.astype(jnp.float32) @ w.astype(jnp.float32).T
            + b.astype(jnp.float32)).reshape(N, 2 * c_h, 1)

    itemsize = jnp.dtype(x.dtype).itemsize
    per_batch = c_h * T * itemsize
    nb = _pick_batch_block(N, per_batch)
    grid = (N // nb,)

    # Explicit VMEM budget: double-buffered x + out blocks, cond block
    # (last dim pads to 128 lanes), plus headroom.
    cond_block_bytes = nb * 2 * c_h * 128 * 4
    vmem_limit = int(4 * nb * per_batch + 2 * cond_block_bytes + (2 << 20))
    vmem_limit = min(max(vmem_limit, 16 << 20), 64 << 20)

    kernel = functools.partial(_affine_kernel, c_h=c_h, eps=eps, inv_t=1.0 / T)
    return pl.pallas_call(
        kernel,
        out_shape=jax.ShapeDtypeStruct((N, c_h, T), x.dtype),
        grid=grid,
        in_specs=[
            pl.BlockSpec((nb, c_h, T), lambda n: (n, 0, 0)),
            pl.BlockSpec((nb, 2 * c_h, 1), lambda n: (n, 0, 0)),
        ],
        out_specs=pl.BlockSpec((nb, c_h, T), lambda n: (n, 0, 0)),
        compiler_params=pltpu.CompilerParams(
            dimension_semantics=("parallel",),
            vmem_limit_bytes=vmem_limit),
    )(x, cond)


def affine_layer_reference(x, x_cond, w, b, eps=1e-5):
    """Pure-JAX reference matching the PyTorch forward."""
    c_h = x.shape[1]
    cond = x_cond @ w.T + b                                # nn.Linear
    mean = cond[:, :c_h][..., None]
    std = cond[:, c_h:][..., None]
    mu = jnp.mean(x, axis=-1, keepdims=True)               # InstanceNorm1d
    var = jnp.var(x, axis=-1, keepdims=True)               # biased, like PyTorch
    xn = (x - mu) / jnp.sqrt(var + eps)
    return xn * std + mean


if __name__ == "__main__":
    # Small shapes consistent with the module; T=128 keeps the lane dim dense.
    N, C_COND, C_H, T = 4, 16, 8, 128

    key = jax.random.PRNGKey(0)
    kx, kc, kw, kb = jax.random.split(key, 4)
    x = jax.random.normal(kx, (N, C_H, T), jnp.float32)
    x_cond = jax.random.normal(kc, (N, C_COND), jnp.float32)

    bound = 1.0 / (C_COND ** 0.5)   # nn.Linear default init bounds
    w = jax.random.uniform(kw, (2 * C_H, C_COND), jnp.float32, -bound, bound)
    b = jax.random.uniform(kb, (2 * C_H,), jnp.float32, -bound, bound)

    out = jax.block_until_ready(affine_layer_forward(x, x_cond, w, b))
    assert out.shape == (N, C_H, T), out.shape

    ref = affine_layer_reference(x, x_cond, w, b)
    err = float(jnp.max(jnp.abs(out - ref)))
    assert jnp.allclose(out, ref, atol=1e-4, rtol=1e-4), f"mismatch vs reference: {err}"

    print("KERNEL_OK")
</pallas_src>

<mosaic_0001>
module attributes {stable_mosaic.version = 11 : i64} {
  func.func @_affine_kernel(%arg0: i32, %arg1: memref<2x8x128xf32, #tpu.memory_space<vmem>>, %arg2: memref<2x16x1xf32, #tpu.memory_space<vmem>>, %arg3: memref<2x8x128xf32, #tpu.memory_space<vmem>>) attributes {dimension_semantics = [#tpu.dimension_semantics<parallel>], iteration_bounds = array<i64: 2>, scalar_prefetch = 0 : i64, scratch_operands = 0 : i64, tpu.core_type = #tpu.core_type<tc>, window_params = [{transform_indices = @transform_0, window_bounds = array<i64: 2, 8, 128>}, {transform_indices = @transform_1, window_bounds = array<i64: 2, 16, 1>}, {transform_indices = @transform_2, window_bounds = array<i64: 2, 8, 128>}]} {
    %c0 = arith.constant 0 : index
    %c0_0 = arith.constant 0 : index
    %c0_1 = arith.constant 0 : index
    %0 = vector.load %arg2[%c0, %c0_0, %c0_1] : memref<2x16x1xf32, #tpu.memory_space<vmem>>, vector<2x16x1xf32>
    %1 = vector.extract_strided_slice %0 {offsets = [0, 0, 0], sizes = [2, 8, 1], strides = [1, 1, 1]} : vector<2x16x1xf32> to vector<2x8x1xf32>
    %2 = vector.extract_strided_slice %0 {offsets = [0, 8, 0], sizes = [2, 8, 1], strides = [1, 1, 1]} : vector<2x16x1xf32> to vector<2x8x1xf32>
    %c0_2 = arith.constant 0 : index
    %c0_3 = arith.constant 0 : index
    %c0_4 = arith.constant 0 : index
    %3 = vector.load %arg1[%c0_2, %c0_3, %c0_4] : memref<2x8x128xf32, #tpu.memory_space<vmem>>, vector<2x8x128xf32>
    %cst = arith.constant dense<0.000000e+00> : vector<2x8xf32>
    %4 = vector.multi_reduction <add>, %3, %cst [2] : vector<2x8x128xf32> to vector<2x8xf32>
    %5 = vector.shape_cast %4 : vector<2x8xf32> to vector<2x8x1xf32>
    %cst_5 = arith.constant 7.812500e-03 : f32
    %6 = vector.broadcast %cst_5 : f32 to vector<2x8x1xf32>
    %7 = arith.mulf %5, %6 : vector<2x8x1xf32>
    %c0_6 = arith.constant 0 : index
    %c0_7 = arith.constant 0 : index
    %c0_8 = arith.constant 0 : index
    %8 = vector.load %arg1[%c0_6, %c0_7, %c0_8] : memref<2x8x128xf32, #tpu.memory_space<vmem>>, vector<2x8x128xf32>
    %9 = vector.broadcast %7 : vector<2x8x1xf32> to vector<2x8x128xf32>
    %10 = arith.subf %8, %9 : vector<2x8x128xf32>
    %11 = arith.mulf %10, %10 : vector<2x8x128xf32>
    %cst_9 = arith.constant dense<0.000000e+00> : vector<2x8xf32>
    %12 = vector.multi_reduction <add>, %11, %cst_9 [2] : vector<2x8x128xf32> to vector<2x8xf32>
    %13 = vector.shape_cast %12 : vector<2x8xf32> to vector<2x8x1xf32>
    %cst_10 = arith.constant 7.812500e-03 : f32
    %14 = vector.broadcast %cst_10 : f32 to vector<2x8x1xf32>
    %15 = arith.mulf %13, %14 : vector<2x8x1xf32>
    %cst_11 = arith.constant 9.99999974E-6 : f32
    %16 = vector.broadcast %cst_11 : f32 to vector<2x8x1xf32>
    %17 = arith.addf %15, %16 : vector<2x8x1xf32>
    %18 = math.rsqrt %17 : vector<2x8x1xf32>
    %19 = arith.mulf %18, %2 : vector<2x8x1xf32>
    %c0_12 = arith.constant 0 : index
    %c0_13 = arith.constant 0 : index
    %c0_14 = arith.constant 0 : index
    %20 = vector.load %arg1[%c0_12, %c0_13, %c0_14] : memref<2x8x128xf32, #tpu.memory_space<vmem>>, vector<2x8x128xf32>
    %21 = vector.broadcast %7 : vector<2x8x1xf32> to vector<2x8x128xf32>
    %22 = arith.subf %20, %21 : vector<2x8x128xf32>
    %23 = vector.broadcast %19 : vector<2x8x1xf32> to vector<2x8x128xf32>
    %24 = arith.mulf %22, %23 : vector<2x8x128xf32>
    %25 = vector.broadcast %1 : vector<2x8x1xf32> to vector<2x8x128xf32>
    %26 = arith.addf %24, %25 : vector<2x8x128xf32>
    %c0_15 = arith.constant 0 : index
    %c0_16 = arith.constant 0 : index
    %c0_17 = arith.constant 0 : index
    %27 = vector.load %arg3[%c0_15, %c0_16, %c0_17] : memref<2x8x128xf32, #tpu.memory_space<vmem>>, vector<2x8x128xf32>
    tpu.vector_store %arg3[%c0_15, %c0_16, %c0_17], %26 {strides = array<i32>} : memref<2x8x128xf32, #tpu.memory_space<vmem>>, vector<2x8x128xf32>,
    return
  }
  func.func @transform_0(%arg0: i32) -> (i32, i32, i32) {
    %c0_i32 = arith.constant 0 : i32
    %c0_i32_0 = arith.constant 0 : i32
    %c0_i32_1 = arith.constant 0 : i32
    return %arg0, %c0_i32, %c0_i32_0 : i32, i32, i32
  }
  func.func @transform_1(%arg0: i32) -> (i32, i32, i32) {
    %c0_i32 = arith.constant 0 : i32
    %c0_i32_0 = arith.constant 0 : i32
    %c0_i32_1 = arith.constant 0 : i32
    return %arg0, %c0_i32, %c0_i32_0 : i32, i32, i32
  }
  func.func @transform_2(%arg0: i32) -> (i32, i32, i32) {
    %c0_i32 = arith.constant 0 : i32
    %c0_i32_0 = arith.constant 0 : i32
    %c0_i32_1 = arith.constant 0 : i32
    return %arg0, %c0_i32, %c0_i32_0 : i32, i32, i32
  }
}

</mosaic_0001>

<llo_original>
// kernel: tpu_custom_call.1
$region0: #{tpu_custom_call.1}
  #allocation0 [shape = 'u32[]', space=smem, size = 0x4, offset = 0x4, fixed_abs, tag = 'smem constant byte address 0x4 - core index']
  #allocation1 [shape = 'u32[144,128]{1,0:T(1,128)}', space=vmem, size = 0x12000, scoped, tag = 'internal scratch']
  %s0 = inlined_call_operand.vmem [shape: f32[4,8,128], index: 0, kind: input, shape index: {}]
  %s1 = inlined_call_operand.vmem [shape: f32[4,16,1], index: 1, kind: input, shape index: {}]
  %s2 = inlined_call_operand.hbm [shape: f32[4,8,128], index: 2, kind: output, shape index: {}]
  %s3 = sld [smem:[#allocation0]]
  $region41: #{tpu_custom_call.1} parent=0
    _
  %s5 = ssub.s32 1, %s3
  %s6 = scalar_select 0, %s5, %s3
  $region1: #{tpu_custom_call.1} parent=0
    #allocation2 [shape = 'u8[16384]{0}', space=vmem, size = 0x4000, scoped, tag = 'output window, operand 0']
    #allocation3 [shape = 's32[2]{0}', space=sflag, size = 0x8, scoped, tag = 'scoped memory for tpu_custom_call.1']
    %7 = vsyncpa [#allocation3], 0
    %s8 = scalar_lea.sflag [#allocation3], 1
    %9 = vsyncpa %s8, 0
    loop: start=0, step=1, limit=4
    $region2: #{tpu_custom_call.1} parent=1 // loop_pre_header
      _
    $region3: #{tpu_custom_call.1} parent=1 // loop_header
      %s11 = sphi 0, %s15
      %p12 = scmp.ge.s32.totalorder %s11, 4
      %s21 = sphi 0, %s23
      %s24 = sphi 0, %s21
      %s25 = sphi 0, %s24
      %s41 = sphi 0, %s25
      %s47 = sphi 0, %s49
      %s50 = sphi 0, %s47
      %s51 = sphi 0, %s50
      %s67 = sphi 0, %s51
      %s73 = sphi 0, %s75
      %s76 = sphi 0, %s73
      %s77 = sphi 0, %s76
      %s93 = sphi 0, %s77
    $region4: #{tpu_custom_call.1} parent=1 // loop_header_branch
      %14 = sbr.rel (%p12) target = $region8
    $region5: #{tpu_custom_call.1} parent=1 // loop_body
      %s16 = ssub.s32 %s11, 1
      %s17 = ssub.s32 %s11, 2
      %s18 = sadd.s32 %s11, 1
      %s19 = ssub.s32 %s11, %s18
      %p20 = scmp.eq.s32.totalorder %s19, 0
      %s22 = sadd.s32 %s21, 1
      %s23 = scalar_select %p20, %s21, %s22
      %p26 = pneg %p20
      %p27 = scmp.eq.s32.totalorder %s11, 1
      %p28 = por %p26, %p27
      %p29 = scmp.ne.s32.totalorder %s21, %s24
      %p30 = scmp.eq.s32.totalorder %s11, 0
      %p31 = por %p29, %p30
      %p32 = scmp.ne.s32.totalorder %s21, %s24
      %p33 = scmp.eq.s32.totalorder %s16, 1
      %p34 = por %p32, %p33
      %p35 = scmp.ne.s32.totalorder %s24, %s25
      %p36 = scmp.eq.s32.totalorder %s16, 0
      %p37 = por %p35, %p36
      %p38 = scmp.ne.s32.totalorder %s24, %s25
      %p39 = scmp.eq.s32.totalorder %s17, 1
      %p40 = por %p38, %p39
      %p42 = scmp.ne.s32.totalorder %s25, %s41
      %p43 = scmp.eq.s32.totalorder %s17, 0
      %p44 = por %p42, %p43
      %s45 = ssub.s32 %s11, %s18
      %p46 = scmp.eq.s32.totalorder %s45, 0
      %s48 = sadd.s32 %s47, 1
      %s49 = scalar_select %p46, %s47, %s48
      %p52 = pneg %p46
      %p53 = scmp.eq.s32.totalorder %s11, 1
      %p54 = por %p52, %p53
      %p55 = scmp.ne.s32.totalorder %s47, %s50
      %p56 = scmp.eq.s32.totalorder %s11, 0
      %p57 = por %p55, %p56
      %p58 = scmp.ne.s32.totalorder %s47, %s50
      %p59 = scmp.eq.s32.totalorder %s16, 1
      %p60 = por %p58, %p59
      %p61 = scmp.ne.s32.totalorder %s50, %s51
      %p62 = scmp.eq.s32.totalorder %s16, 0
      %p63 = por %p61, %p62
      %p64 = scmp.ne.s32.totalorder %s50, %s51
      %p65 = scmp.eq.s32.totalorder %s17, 1
      %p66 = por %p64, %p65
      %p68 = scmp.ne.s32.totalorder %s51, %s67
      %p69 = scmp.eq.s32.totalorder %s17, 0
      %p70 = por %p68, %p69
      %s71 = ssub.s32 %s11, %s18
      %p72 = scmp.eq.s32.totalorder %s71, 0
      %s74 = sadd.s32 %s73, 1
      %s75 = scalar_select %p72, %s73, %s74
      %p78 = pneg %p72
      %p79 = scmp.eq.s32.totalorder %s11, 1
      %p80 = por %p78, %p79
      %p81 = scmp.ne.s32.totalorder %s73, %s76
      %p82 = scmp.eq.s32.totalorder %s11, 0
      %p83 = por %p81, %p82
      %p84 = scmp.ne.s32.totalorder %s73, %s76
      %p85 = scmp.eq.s32.totalorder %s16, 1
      %p86 = por %p84, %p85
      %p87 = scmp.ne.s32.totalorder %s76, %s77
      %p88 = scmp.eq.s32.totalorder %s16, 0
      %p89 = por %p87, %p88
      %p90 = scmp.ne.s32.totalorder %s76, %s77
      %p91 = scmp.eq.s32.totalorder %s17, 1
      %p92 = por %p90, %p91
      %p94 = scmp.ne.s32.totalorder %s77, %s93
      %p95 = scmp.eq.s32.totalorder %s17, 0
      %p96 = por %p94, %p95
      %p97 = scmp.le.s32.totalorder 1, %s11
      %p98 = scmp.lt.s32.totalorder %s11, 3
      %p99 = pnand %p97, %p98
      %p100 = pneg %p99
      // Predicated region
      $region9: #{tpu_custom_call.1} parent=5 // pred_check
        _
      $region10: #{tpu_custom_call.1} parent=5 // pred_check_branch
        %102 = sbr.rel (%p99) target = $region12
      $region11: #{tpu_custom_call.1} parent=5 // pred_region
        %s103 = ssub.s32 %s11, 1
      $region12: #{tpu_custom_call.1} parent=5 // pred_fallthru
        _
      %p104 = scmp.lt.s32.totalorder %s11, 2
      // Predicated region
      $region13: #{tpu_custom_call.1} parent=5 // pred_check
        %p105 = pneg %p104
      $region14: #{tpu_custom_call.1} parent=5 // pred_check_branch
        %107 = sbr.rel (%p105) target = $region16
      $region15: #{tpu_custom_call.1} parent=5 // pred_region
        // Predicated region
        $region17: #{tpu_custom_call.1} parent=15 // pred_check
          %p108 = pneg %p31
        $region18: #{tpu_custom_call.1} parent=15 // pred_check_branch
          %110 = sbr.rel (%p108) target = $region20
        $region19: #{tpu_custom_call.1} parent=15 // pred_region
          %s111 = smul.u32 2, %s11
          %p112 = scmp.lt.s32.totalorder %s111, 3
          %s113 = scalar_select %p112, %s111, 3
          %s114 = smul.addr %s113, 8
          %s115 = scalar_lea.vmem %s0, %s114
          %s116 = smul.u32 2, %s11
        $region20: #{tpu_custom_call.1} parent=15 // pred_fallthru
          _
        // Predicated region
        $region21: #{tpu_custom_call.1} parent=15 // pred_check
          %p117 = pneg %p57
        $region22: #{tpu_custom_call.1} parent=15 // pred_check_branch
          %119 = sbr.rel (%p117) target = $region24
        $region23: #{tpu_custom_call.1} parent=15 // pred_region
          %s120 = smul.u32 2, %s11
          %p121 = scmp.lt.s32.totalorder %s120, 3
          %s122 = scalar_select %p121, %s120, 3
          %s123 = smul.addr %s122, 2
          %s124 = smul.addr %s123, 8
          %s125 = scalar_lea.vmem %s1, %s124
          %s126 = smul.u32 2, %s11
        $region24: #{tpu_custom_call.1} parent=15 // pred_fallthru
          _
      $region16: #{tpu_custom_call.1} parent=5 // pred_fallthru
        _
      %p127 = scmp.le.s32.totalorder 1, %s11
      %p128 = scmp.lt.s32.totalorder %s11, 3
      %p129 = pnand %p127, %p128
      %p130 = pneg %p129
      // Predicated region
      $region25: #{tpu_custom_call.1} parent=5 // pred_check
        _
      $region26: #{tpu_custom_call.1} parent=5 // pred_check_branch
        %132 = sbr.rel (%p129) target = $region28
      $region27: #{tpu_custom_call.1} parent=5 // pred_region
        %s133 = ssub.s32 %s11, 1
        %s134 = smul.u32 2, %s16
        %p135 = scmp.lt.s32.totalorder %s134, 3
        %s136 = scalar_select %p135, %s134, 3
        %s137 = smul.addr %s136, 8
        %s138 = scalar_lea.vmem %s0, %s137
        %p139 = pneg %p37
        %p140 = pneg %p34
        %s141 = smul.u32 2, %s16
        %p142 = scmp.lt.s32.totalorder %s141, 3
        %s143 = scalar_select %p142, %s141, 3
        %s144 = smul.addr %s143, 2
        %s145 = smul.addr %s144, 8
        %s146 = scalar_lea.vmem %s1, %s145
        %p147 = pneg %p63
        %p148 = pneg %p60
        %p149 = pneg %p89
        %p150 = pneg %p86
        %s151 = sand.u32 %s76, 1
        %s152 = scalar_lea.sflag [#allocation3], %s151
        %s153 = sand.u32 %s76, 1
        %s154 = smul.addr %s153, 16
        %s155 = scalar_lea.vmem [#allocation2], %s154
        %s156 = smul.u32 2, %s16
        %p157 = scmp.lt.s32.totalorder %s156, 3
        %s158 = scalar_select %p157, %s156, 3
        %s159 = smul.addr %s158, 8
        %s160 = scalar_lea.vmem %s0, %s159
        %s161 = smul.u32 2, %s16
        %s162 = smul.u32 2, %s16
        %p163 = scmp.lt.s32.totalorder %s162, 3
        %s164 = scalar_select %p163, %s162, 3
        %s165 = smul.addr %s164, 2
        %s166 = smul.addr %s165, 8
        %s167 = scalar_lea.vmem %s1, %s166
        %s168 = smul.u32 2, %s16
        %s169 = smul.u32 2, %s16
        %v170 = vld [vmem:[%s167] sm:$0xff]
        %v171 = vld [vmem:[%s167 + $0x8] sm:$0xff]
        %v172 = vld [vmem:[%s167 + $0x10] sm:$0xff]
        %v173 = vld [vmem:[%s167 + $0x18] sm:$0xff]
        %v174 = vld [vmem:[%s160] sm:$0xff]
        %v175 = vld [vmem:[%s160 + $0x8] sm:$0xff]
        %176 = vadd.xlane.f32.xlu0 %v174
        %v177 = vpop.xlane.xlu0 %176
        %178 = vadd.xlane.f32.xlu0 %v175
        %v179 = vpop.xlane.xlu0 %178
        %v180 = vmul.f32 %v177, 0.0078125
        %v181 = vmul.f32 %v179, 0.0078125
        %v182 = vsub.f32 %v174, %v180
        %v183 = vsub.f32 %v175, %v181
        %v184 = vmul.f32 %v182, %v182
        %v185 = vmul.f32 %v183, %v183
        %186 = vadd.xlane.f32.xlu0 %v184
        %v187 = vpop.xlane.xlu0 %186
        %188 = vadd.xlane.f32.xlu0 %v185
        %v189 = vpop.xlane.xlu0 %188
        %v190 = vmul.f32 %v187, 0.0078125
        %v191 = vmul.f32 %v189, 0.0078125
        %v192 = vadd.f32 %v190, 1e-05
        %v193 = vadd.f32 %v191, 1e-05
        %v194 = vrsqrt.pop %v192
        %v195 = vrsqrt.pop %v193
        %v196 = vmul.f32 %v194, %v171
        %v197 = vmul.f32 %v195, %v173
        %199 = vset.pattern.permute.xlu0 0
        %200 = vperm.xlu0 %199, %v196
        %v201 = vpop.permute.xlu0 %200
        %204 = vset.pattern.permute.xlu0 0
        %205 = vperm.xlu0 %204, %v197
        %v206 = vpop.permute.xlu0 %205
        %v208 = vmul.f32 %v182, %v201
        %v209 = vmul.f32 %v183, %v206
        %211 = vset.pattern.permute.xlu0 0
        %212 = vperm.xlu0 %211, %v170
        %v213 = vpop.permute.xlu0 %212
        %216 = vset.pattern.permute.xlu0 0
        %217 = vperm.xlu0 %216, %v172
        %v218 = vpop.permute.xlu0 %217
        %v220 = vadd.f32 %v208, %v213
        %v221 = vadd.f32 %v209, %v218
        %222 = vst [vmem:[%s155] sm:$0xff] %v220
        %223 = vst [vmem:[%s155 + $0x8] sm:$0xff] %v221
        %s224 = sand.u32 %s76, 1
        %s225 = scalar_lea.sflag [#allocation3], %s224
        %s226 = sand.u32 %s76, 1
        %s227 = smul.addr %s226, 16
        %s228 = scalar_lea.vmem [#allocation2], %s227
        // Predicated region
        $region29: #{tpu_custom_call.1} parent=27 // pred_check
          %p229 = pneg %p86
        $region30: #{tpu_custom_call.1} parent=27 // pred_check_branch
          %231 = sbr.rel (%p229) target = $region32
        $region31: #{tpu_custom_call.1} parent=27 // pred_region
          %s232 = smul.u32 2, %s16
          %s234 = ssub.s32 256, 256
          %235 = vsyncadd %s225, %s234
          %s236 = smul.addr %s232, 128
          %s237 = scalar_lea.hbm %s2, %s236
          %s238 = sshll.u32 %s228, 4
          %s239 = int_to_ptr.vmem [resolvable:$true] %s238
          %244 = dma.vmem_to_hbm [thread:$0]  %s239, 256, %s237, %s225, 128, 128, 8
        $region32: #{tpu_custom_call.1} parent=27 // pred_fallthru
          _
      $region28: #{tpu_custom_call.1} parent=5 // pred_fallthru
        _
      %p245 = scmp.le.s32.totalorder 2, %s11
      // Predicated region
      $region33: #{tpu_custom_call.1} parent=5 // pred_check
        %p246 = pneg %p245
      $region34: #{tpu_custom_call.1} parent=5 // pred_check_branch
        %248 = sbr.rel (%p246) target = $region36
      $region35: #{tpu_custom_call.1} parent=5 // pred_region
        %s249 = ssub.s32 %s11, 2
        // Predicated region
        $region37: #{tpu_custom_call.1} parent=35 // pred_check
          %p250 = pneg %p92
        $region38: #{tpu_custom_call.1} parent=35 // pred_check_branch
          %252 = sbr.rel (%p250) target = $region40
        $region39: #{tpu_custom_call.1} parent=35 // pred_region
          %s253 = sand.u32 %s77, 1
          %s254 = scalar_lea.sflag [#allocation3], %s253
          %s255 = sand.u32 %s77, 1
          %s256 = smul.addr %s255, 16
          %s257 = scalar_lea.vmem [#allocation2], %s256
          %258 = dma.done %s254, 256
        $region40: #{tpu_custom_call.1} parent=35 // pred_fallthru
          _
      $region36: #{tpu_custom_call.1} parent=5 // pred_fallthru
        _
    $region6: #{tpu_custom_call.1} parent=1 // loop_footer
      %s15 = sadd.s32 1, %s11
    $region7: #{tpu_custom_call.1} parent=1 // loop_footer_branch
      %10 = sbr.rel target = $region3
    $region8: #{tpu_custom_call.1} parent=1 // loop_exit
      _
    %259 = vsyncpa [#allocation3], 1
    %s260 = scalar_lea.sflag [#allocation3], 1
    %261 = vsyncpa %s260, 1

</llo_original>
